<compile_context>
chip_gen: v7x
topology: tpu7x:2x2x1
jax: 0.10.0
libtpu: 0.0.40
codegen_flags: <defaults>
</compile_context>

<pallas_src>
import functools

import jax
import jax.numpy as jnp
from jax import lax
from jax.experimental import pallas as pl
from jax.experimental.pallas import tpu as pltpu


def _pick_hw_tile(hw, max_tile=1024):
    """Largest multiple of 128 that divides hw and is <= max_tile, else full hw."""
    start = (min(max_tile, hw) // 128) * 128
    for t in range(start, 0, -128):
        if hw % t == 0:
            return t
    return hw  # full extent of the last dim is always a legal block size


def _tsm_conv_kernel(x_ref, w_ref, b_ref, o_ref, *, fold, n_segment):
    # x_ref: (1, ns, c, HW_T)   w_ref: (cout, c)   b_ref: (cout, 1)
    # o_ref: (1, ns, cout, HW_T)
    c = x_ref.shape[2]

    w = w_ref[...]          # resident across grid steps (constant index_map)
    b = b_ref[...]          # (cout, 1), broadcast once per block

    # Channel mask hoisted to (c, 1): one compare per channel, not per element.
    ch = lax.broadcasted_iota(jnp.int32, (c, 1), 0)
    take_future = ch < fold                                   # out[t] <- x[t+1]
    take_past = jnp.logical_and(ch >= fold, ch < 2 * fold)    # out[t] <- x[t-1]

    # n_segment is a small static constant (e.g. 3 or 8): unrolled Python loop.
    for t in range(n_segment):
        x_cur = x_ref[0, t]                                   # (c, HW_T)
        x_next = x_ref[0, t + 1] if t + 1 < n_segment else 0.0
        x_prev = x_ref[0, t - 1] if t > 0 else 0.0
        shifted = jnp.where(take_future, x_next,
                            jnp.where(take_past, x_prev, x_cur))

        # Pointwise (1x1) conv == plain 2-D channel matmul on the MXU.
        out_t = jnp.dot(w, shifted, preferred_element_type=jnp.float32) + b
        o_ref[0, t] = out_t.astype(o_ref.dtype)


def temporal_shift_forward(x_nchw, weight, bias, *, n_segment, n_div):
    """x_nchw: (nt, c, h, w); weight: (cout, c) 1x1 conv; bias: (cout,)."""
    nt, c, h, w = x_nchw.shape
    assert nt % n_segment == 0
    nb = nt // n_segment
    fold = c // n_div
    hw = h * w
    cout = weight.shape[0]

    # Glue: reshape to the kernel layout (n_batch, n_segment, c, h*w) so the
    # spatial axis is lane-dense and channels sit on sublanes.
    x4 = x_nchw.reshape(nb, n_segment, c, hw)
    b2 = bias.reshape(cout, 1)

    hw_tile = _pick_hw_tile(hw)
    n_hw = hw // hw_tile

    kernel = functools.partial(_tsm_conv_kernel, fold=fold, n_segment=n_segment)

    itemsize = x_nchw.dtype.itemsize
    in_block_bytes = n_segment * c * hw_tile * itemsize
    out_block_bytes = n_segment * cout * hw_tile * itemsize
    const_bytes = weight.size * weight.dtype.itemsize + cout * 4
    # double-buffered streaming blocks + resident weights + slack, clamped so it
    # is safe on v7x's 64 MiB physical VMEM.
    vmem_budget = 2 * (in_block_bytes + out_block_bytes) + const_bytes + (4 << 20)
    vmem_limit = int(min(max(vmem_budget, 32 << 20), 64 << 20))

    cost = pl.CostEstimate(
        flops=2 * nt * cout * c * hw,
        transcendentals=0,
        bytes_accessed=(x4.size * x4.dtype.itemsize
                        + weight.size * weight.dtype.itemsize
                        + bias.size * bias.dtype.itemsize
                        + nb * n_segment * cout * hw * itemsize),
    )

    out4 = pl.pallas_call(
        kernel,
        out_shape=jax.ShapeDtypeStruct((nb, n_segment, cout, hw), x_nchw.dtype),
        grid_spec=pltpu.PrefetchScalarGridSpec(
            num_scalar_prefetch=0,
            grid=(nb, n_hw),
            in_specs=[
                pl.BlockSpec((1, n_segment, c, hw_tile),
                             lambda b, s: (b, 0, 0, s)),
                pl.BlockSpec((cout, c), lambda b, s: (0, 0)),
                pl.BlockSpec((cout, 1), lambda b, s: (0, 0)),
            ],
            out_specs=pl.BlockSpec((1, n_segment, cout, hw_tile),
                                   lambda b, s: (b, 0, 0, s)),
        ),
        compiler_params=pltpu.CompilerParams(
            dimension_semantics=("parallel", "parallel"),
            vmem_limit_bytes=vmem_limit,
        ),
        cost_estimate=cost,
    )(x4, weight, b2)

    return out4.reshape(nt, cout, h, w)


def _reference_forward(x_nchw, weight, bias, *, n_segment, n_div):
    """Pure-JAX reference mirroring the PyTorch code, for verification."""
    nt, c, h, w = x_nchw.shape
    nb = nt // n_segment
    fold = c // n_div
    x = x_nchw.reshape(nb, n_segment, c, h, w)
    out = jnp.zeros_like(x)
    out = out.at[:, :-1, :fold].set(x[:, 1:, :fold])
    out = out.at[:, 1:, fold:2 * fold].set(x[:, :-1, fold:2 * fold])
    out = out.at[:, :, 2 * fold:].set(x[:, :, 2 * fold:])
    out = out.reshape(nt, c, h, w)
    # 1x1 conv (NCHW): y[n, o, h, w] = sum_c W[o, c] * out[n, c, h, w] + b[o]
    y = jnp.einsum("oc,nchw->nohw", weight, out) + bias[None, :, None, None]
    return y


if __name__ == "__main__":
    n_segment = 3
    n_div = 8
    n_batch = 2
    c = 8           # fold = c // n_div = 1
    h = w = 16      # hw = 256 -> one lane-dense tile
    nt = n_batch * n_segment
    cout = c        # net: 1x1 Conv2d(c -> c)

    key = jax.random.PRNGKey(0)
    kx, kw, kb = jax.random.split(key, 3)
    # NOTE: for large/realistic shapes on v6e/v7x, feed x/weight as bfloat16
    # (accumulation stays f32 via preferred_element_type) to halve HBM traffic.
    x = jax.random.normal(kx, (nt, c, h, w), dtype=jnp.float32)
    weight = 0.1 * jax.random.normal(kw, (cout, c), dtype=jnp.float32)
    bias = 0.1 * jax.random.normal(kb, (cout,), dtype=jnp.float32)

    y = temporal_shift_forward(x, weight, bias, n_segment=n_segment, n_div=n_div)
    y = jax.block_until_ready(y)

    y_ref = _reference_forward(x, weight, bias, n_segment=n_segment, n_div=n_div)
    assert y.shape == (nt, cout, h, w)
    assert jnp.allclose(y, y_ref, atol=1e-5, rtol=1e-5), "mismatch vs reference"

    print("KERNEL_OK")
</pallas_src>

<mosaic_0001>
module attributes {stable_mosaic.version = 11 : i64} {
  func.func @_tsm_conv_kernel(%arg0: i32, %arg1: i32, %arg2: memref<1x3x8x256xf32, #tpu.memory_space<vmem>>, %arg3: memref<8x8xf32, #tpu.memory_space<vmem>>, %arg4: memref<8x1xf32, #tpu.memory_space<vmem>>, %arg5: memref<1x3x8x256xf32, #tpu.memory_space<vmem>>) attributes {dimension_semantics = [#tpu.dimension_semantics<parallel>, #tpu.dimension_semantics<parallel>], iteration_bounds = array<i64: 2, 1>, scalar_prefetch = 0 : i64, scratch_operands = 0 : i64, tpu.core_type = #tpu.core_type<tc>, window_params = [{transform_indices = @transform_0, window_bounds = array<i64: 1, 3, 8, 256>}, {pipeline_mode = #tpu.pipeline_mode<synchronous>, transform_indices = @transform_1, window_bounds = array<i64: 8, 8>}, {pipeline_mode = #tpu.pipeline_mode<synchronous>, transform_indices = @transform_2, window_bounds = array<i64: 8, 1>}, {transform_indices = @transform_3, window_bounds = array<i64: 1, 3, 8, 256>}]} {
    %c0 = arith.constant 0 : index
    %c0_0 = arith.constant 0 : index
    %0 = vector.load %arg3[%c0, %c0_0] : memref<8x8xf32, #tpu.memory_space<vmem>>, vector<8x8xf32>
    %c0_1 = arith.constant 0 : index
    %c0_2 = arith.constant 0 : index
    %1 = vector.load %arg4[%c0_1, %c0_2] : memref<8x1xf32, #tpu.memory_space<vmem>>, vector<8x1xf32>
    %2 = tpu.iota {dimensions = array<i32: 0>} : vector<8x1xi32>
    %c1_i32 = arith.constant 1 : i32
    %3 = vector.broadcast %c1_i32 : i32 to vector<8x1xi32>
    %4 = arith.cmpi slt, %2, %3 : vector<8x1xi32>
    %c1_i32_3 = arith.constant 1 : i32
    %5 = vector.broadcast %c1_i32_3 : i32 to vector<8x1xi32>
    %6 = arith.cmpi sge, %2, %5 : vector<8x1xi32>
    %c2_i32 = arith.constant 2 : i32
    %7 = vector.broadcast %c2_i32 : i32 to vector<8x1xi32>
    %8 = arith.cmpi slt, %2, %7 : vector<8x1xi32>
    %9 = arith.andi %6, %8 : vector<8x1xi1>
    %c0_4 = arith.constant 0 : index
    %c0_5 = arith.constant 0 : index
    %c0_6 = arith.constant 0 : index
    %c0_7 = arith.constant 0 : index
    %10 = vector.load %arg2[%c0_4, %c0_5, %c0_6, %c0_7] : memref<1x3x8x256xf32, #tpu.memory_space<vmem>>, vector<1x1x8x256xf32>
    %11 = vector.shape_cast %10 : vector<1x1x8x256xf32> to vector<8x256xf32>
    %c0_8 = arith.constant 0 : index
    %c1 = arith.constant 1 : index
    %c0_9 = arith.constant 0 : index
    %c0_10 = arith.constant 0 : index
    %12 = vector.load %arg2[%c0_8, %c1, %c0_9, %c0_10] : memref<1x3x8x256xf32, #tpu.memory_space<vmem>>, vector<1x1x8x256xf32>
    %13 = vector.shape_cast %12 : vector<1x1x8x256xf32> to vector<8x256xf32>
    %cst = arith.constant 0.000000e+00 : f32
    %14 = vector.shape_cast %9 : vector<8x1xi1> to vector<8x1xi1>
    %15 = vector.broadcast %14 : vector<8x1xi1> to vector<8x256xi1>
    %16 = vector.broadcast %cst : f32 to vector<8x256xf32>
    %17 = arith.select %15, %16, %11 : vector<8x256xi1>, vector<8x256xf32>
    %18 = vector.shape_cast %4 : vector<8x1xi1> to vector<8x1xi1>
    %19 = vector.broadcast %18 : vector<8x1xi1> to vector<8x256xi1>
    %20 = arith.select %19, %13, %17 : vector<8x256xi1>, vector<8x256xf32>
    %cst_11 = arith.constant dense<0.000000e+00> : vector<8x256xf32>
    %21 = tpu.matmul %0, %20, %cst_11 {dimension_numbers = #tpu.dot_dimension_numbers<[1], [0], [0], [1], [0, 0, 1, 1], [], []>} : vector<8x8xf32>, vector<8x256xf32>, vector<8x256xf32> -> vector<8x256xf32>
    %22 = vector.broadcast %1 : vector<8x1xf32> to vector<8x256xf32>
    %23 = arith.addf %21, %22 : vector<8x256xf32>
    %c0_12 = arith.constant 0 : index
    %c0_13 = arith.constant 0 : index
    %c0_14 = arith.constant 0 : index
    %c0_15 = arith.constant 0 : index
    %24 = vector.load %arg5[%c0_12, %c0_13, %c0_14, %c0_15] : memref<1x3x8x256xf32, #tpu.memory_space<vmem>>, vector<1x1x8x256xf32>
    %25 = vector.shape_cast %24 : vector<1x1x8x256xf32> to vector<8x256xf32>
    %26 = vector.shape_cast %23 : vector<8x256xf32> to vector<1x1x8x256xf32>
    tpu.vector_store %arg5[%c0_12, %c0_13, %c0_14, %c0_15], %26 {strides = array<i32>} : memref<1x3x8x256xf32, #tpu.memory_space<vmem>>, vector<1x1x8x256xf32>,
    %c0_16 = arith.constant 0 : index
    %c1_17 = arith.constant 1 : index
    %c0_18 = arith.constant 0 : index
    %c0_19 = arith.constant 0 : index
    %27 = vector.load %arg2[%c0_16, %c1_17, %c0_18, %c0_19] : memref<1x3x8x256xf32, #tpu.memory_space<vmem>>, vector<1x1x8x256xf32>
    %28 = vector.shape_cast %27 : vector<1x1x8x256xf32> to vector<8x256xf32>
    %c0_20 = arith.constant 0 : index
    %c2 = arith.constant 2 : index
    %c0_21 = arith.constant 0 : index
    %c0_22 = arith.constant 0 : index
    %29 = vector.load %arg2[%c0_20, %c2, %c0_21, %c0_22] : memref<1x3x8x256xf32, #tpu.memory_space<vmem>>, vector<1x1x8x256xf32>
    %30 = vector.shape_cast %29 : vector<1x1x8x256xf32> to vector<8x256xf32>
    %c0_23 = arith.constant 0 : index
    %c0_24 = arith.constant 0 : index
    %c0_25 = arith.constant 0 : index
    %c0_26 = arith.constant 0 : index
    %31 = vector.load %arg2[%c0_23, %c0_24, %c0_25, %c0_26] : memref<1x3x8x256xf32, #tpu.memory_space<vmem>>, vector<1x1x8x256xf32>
    %32 = vector.shape_cast %31 : vector<1x1x8x256xf32> to vector<8x256xf32>
    %33 = vector.shape_cast %9 : vector<8x1xi1> to vector<8x1xi1>
    %34 = vector.broadcast %33 : vector<8x1xi1> to vector<8x256xi1>
    %35 = arith.select %34, %32, %28 : vector<8x256xi1>, vector<8x256xf32>
    %36 = vector.shape_cast %4 : vector<8x1xi1> to vector<8x1xi1>
    %37 = vector.broadcast %36 : vector<8x1xi1> to vector<8x256xi1>
    %38 = arith.select %37, %30, %35 : vector<8x256xi1>, vector<8x256xf32>
    %cst_27 = arith.constant dense<0.000000e+00> : vector<8x256xf32>
    %39 = tpu.matmul %0, %38, %cst_27 {dimension_numbers = #tpu.dot_dimension_numbers<[1], [0], [0], [1], [0, 0, 1, 1], [], []>} : vector<8x8xf32>, vector<8x256xf32>, vector<8x256xf32> -> vector<8x256xf32>
    %40 = vector.broadcast %1 : vector<8x1xf32> to vector<8x256xf32>
    %41 = arith.addf %39, %40 : vector<8x256xf32>
    %c0_28 = arith.constant 0 : index
    %c1_29 = arith.constant 1 : index
    %c0_30 = arith.constant 0 : index
    %c0_31 = arith.constant 0 : index
    %42 = vector.load %arg5[%c0_28, %c1_29, %c0_30, %c0_31] : memref<1x3x8x256xf32, #tpu.memory_space<vmem>>, vector<1x1x8x256xf32>
    %43 = vector.shape_cast %42 : vector<1x1x8x256xf32> to vector<8x256xf32>
    %44 = vector.shape_cast %41 : vector<8x256xf32> to vector<1x1x8x256xf32>
    tpu.vector_store %arg5[%c0_28, %c1_29, %c0_30, %c0_31], %44 {strides = array<i32>} : memref<1x3x8x256xf32, #tpu.memory_space<vmem>>, vector<1x1x8x256xf32>,
    %c0_32 = arith.constant 0 : index
    %c2_33 = arith.constant 2 : index
    %c0_34 = arith.constant 0 : index
    %c0_35 = arith.constant 0 : index
    %45 = vector.load %arg2[%c0_32, %c2_33, %c0_34, %c0_35] : memref<1x3x8x256xf32, #tpu.memory_space<vmem>>, vector<1x1x8x256xf32>
    %46 = vector.shape_cast %45 : vector<1x1x8x256xf32> to vector<8x256xf32>
    %c0_36 = arith.constant 0 : index
    %c1_37 = arith.constant 1 : index
    %c0_38 = arith.constant 0 : index
    %c0_39 = arith.constant 0 : index
    %47 = vector.load %arg2[%c0_36, %c1_37, %c0_38, %c0_39] : memref<1x3x8x256xf32, #tpu.memory_space<vmem>>, vector<1x1x8x256xf32>
    %48 = vector.shape_cast %47 : vector<1x1x8x256xf32> to vector<8x256xf32>
    %49 = vector.shape_cast %9 : vector<8x1xi1> to vector<8x1xi1>
    %50 = vector.broadcast %49 : vector<8x1xi1> to vector<8x256xi1>
    %51 = arith.select %50, %48, %46 : vector<8x256xi1>, vector<8x256xf32>
    %cst_40 = arith.constant 0.000000e+00 : f32
    %52 = vector.shape_cast %4 : vector<8x1xi1> to vector<8x1xi1>
    %53 = vector.broadcast %52 : vector<8x1xi1> to vector<8x256xi1>
    %54 = vector.broadcast %cst_40 : f32 to vector<8x256xf32>
    %55 = arith.select %53, %54, %51 : vector<8x256xi1>, vector<8x256xf32>
    %cst_41 = arith.constant dense<0.000000e+00> : vector<8x256xf32>
    %56 = tpu.matmul %0, %55, %cst_41 {dimension_numbers = #tpu.dot_dimension_numbers<[1], [0], [0], [1], [0, 0, 1, 1], [], []>} : vector<8x8xf32>, vector<8x256xf32>, vector<8x256xf32> -> vector<8x256xf32>
    %57 = vector.broadcast %1 : vector<8x1xf32> to vector<8x256xf32>
    %58 = arith.addf %56, %57 : vector<8x256xf32>
    %c0_42 = arith.constant 0 : index
    %c2_43 = arith.constant 2 : index
    %c0_44 = arith.constant 0 : index
    %c0_45 = arith.constant 0 : index
    %59 = vector.load %arg5[%c0_42, %c2_43, %c0_44, %c0_45] : memref<1x3x8x256xf32, #tpu.memory_space<vmem>>, vector<1x1x8x256xf32>
    %60 = vector.shape_cast %59 : vector<1x1x8x256xf32> to vector<8x256xf32>
    %61 = vector.shape_cast %58 : vector<8x256xf32> to vector<1x1x8x256xf32>
    tpu.vector_store %arg5[%c0_42, %c2_43, %c0_44, %c0_45], %61 {strides = array<i32>} : memref<1x3x8x256xf32, #tpu.memory_space<vmem>>, vector<1x1x8x256xf32>,
    return
  }
  func.func @transform_0(%arg0: i32, %arg1: i32) -> (i32, i32, i32, i32) {
    %c0_i32 = arith.constant 0 : i32
    %c0_i32_0 = arith.constant 0 : i32
    %c0_i32_1 = arith.constant 0 : i32
    return %arg0, %c0_i32, %c0_i32_0, %arg1 : i32, i32, i32, i32
  }
  func.func @transform_1(%arg0: i32, %arg1: i32) -> (i32, i32) {
    %c0_i32 = arith.constant 0 : i32
    %c0_i32_0 = arith.constant 0 : i32
    %c0_i32_1 = arith.constant 0 : i32
    return %c0_i32, %c0_i32_0 : i32, i32
  }
  func.func @transform_2(%arg0: i32, %arg1: i32) -> (i32, i32) {
    %c0_i32 = arith.constant 0 : i32
    %c0_i32_0 = arith.constant 0 : i32
    %c0_i32_1 = arith.constant 0 : i32
    return %c0_i32, %c0_i32_0 : i32, i32
  }
  func.func @transform_3(%arg0: i32, %arg1: i32) -> (i32, i32, i32, i32) {
    %c0_i32 = arith.constant 0 : i32
    %c0_i32_0 = arith.constant 0 : i32
    %c0_i32_1 = arith.constant 0 : i32
    return %arg0, %c0_i32, %c0_i32_0, %arg1 : i32, i32, i32, i32
  }
}

</mosaic_0001>

<llo_original>
// kernel: tpu_custom_call.1
$region0: #{tpu_custom_call.1}
  #allocation0 [shape = 'u32[]', space=smem, size = 0x4, offset = 0x4, fixed_abs, tag = 'smem constant byte address 0x4 - core index']
  #allocation1 [shape = 'u32[144,128]{1,0:T(1,128)}', space=vmem, size = 0x12000, scoped, tag = 'internal scratch']
  %s0 = inlined_call_operand.hbm [shape: f32[2,3,8,256], index: 0, kind: input, shape index: {}]
  %s1 = inlined_call_operand.vmem [shape: f32[8,8], index: 1, kind: input, shape index: {}]
  %s2 = inlined_call_operand.vmem [shape: f32[8,1], index: 2, kind: input, shape index: {}]
  %s3 = inlined_call_operand.hbm [shape: f32[2,3,8,256], index: 3, kind: output, shape index: {}]
  %s4 = sld [smem:[#allocation0]]
  $region49: #{tpu_custom_call.1} parent=0
    _
  %s6 = ssub.s32 1, %s4
  %s7 = scalar_select 0, %s6, %s4
  $region1: #{tpu_custom_call.1} parent=0
    #allocation2 [shape = 'u8[49152]{0}', space=vmem, size = 0xc000, scoped, tag = 'input window, operand 0']
    #allocation3 [shape = 's32[2]{0}', space=sflag, size = 0x8, scoped, tag = 'scoped memory for tpu_custom_call.1']
    #allocation4 [shape = 's32[2]{0}', space=sflag, size = 0x8, scoped, tag = 'scoped memory for tpu_custom_call.1']
    #allocation5 [shape = 'u8[49152]{0}', space=vmem, size = 0xc000, scoped, tag = 'output window, operand 0']
    %8 = vsyncpa [#allocation3], 0
    %s9 = scalar_lea.sflag [#allocation3], 1
    %10 = vsyncpa %s9, 0
    %11 = vsyncpa [#allocation4], 0
    %s12 = scalar_lea.sflag [#allocation4], 1
    %13 = vsyncpa %s12, 0
    loop: start=0, step=1, limit=4
    $region2: #{tpu_custom_call.1} parent=1 // loop_pre_header
      _
    $region3: #{tpu_custom_call.1} parent=1 // loop_header
      %s15 = sphi 0, %s19
      %p16 = scmp.ge.s32.totalorder %s15, 4
      %s22 = sphi 0, %s34
      %s23 = sphi 0, %s30
      %s24 = sphi 0, %s22
      %s25 = sphi 0, %s23
      %s26 = sphi 0, %s24
      %s27 = sphi 0, %s25
      %s39 = sphi 0, %s41
      %s42 = sphi 0, %s39
      %s43 = sphi 0, %s42
      %s59 = sphi 0, %s43
      %s63 = sphi 0, %s63
      %s65 = sphi 0, %s63
      %s66 = sphi 0, %s65
      %s80 = sphi 0, %s66
      %s84 = sphi 0, %s84
      %s86 = sphi 0, %s84
      %s87 = sphi 0, %s86
      %s101 = sphi 0, %s87
      %s109 = sphi 0, %s111
      %s112 = sphi 0, %s109
      %s113 = sphi 0, %s112
      %s129 = sphi 0, %s113
    $region4: #{tpu_custom_call.1} parent=1 // loop_header_branch
      %18 = sbr.rel (%p16) target = $region8
    $region5: #{tpu_custom_call.1} parent=1 // loop_body
      %s20 = ssub.s32 %s15, 1
      %s21 = ssub.s32 %s15, 2
      %s28 = sadd.s32 1, %s23
      %p29 = scmp.ge.s32.totalorder %s28, 1
      %s30 = scalar_select %p29, 0, %s28
      %s31 = sadd.s32 1, %s22
      %s32 = scalar_select %p29, %s31, %s22
      %p33 = scmp.ge.s32.totalorder %s32, 2
      %s34 = scalar_select %p33, 0, %s32
      %s35 = ssub.s32 %s22, %s34
      %s36 = ssub.s32 %s23, %s30
      %s37 = sor.u32 %s35, %s36
      %p38 = scmp.eq.s32.totalorder %s37, 0
      %s40 = sadd.s32 %s39, 1
      %s41 = scalar_select %p38, %s39, %s40
      %p44 = pneg %p38
      %p45 = scmp.eq.s32.totalorder %s15, 1
      %p46 = por %p44, %p45
      %p47 = scmp.ne.s32.totalorder %s39, %s42
      %p48 = scmp.eq.s32.totalorder %s15, 0
      %p49 = por %p47, %p48
      %p50 = scmp.ne.s32.totalorder %s39, %s42
      %p51 = scmp.eq.s32.totalorder %s20, 1
      %p52 = por %p50, %p51
      %p53 = scmp.ne.s32.totalorder %s42, %s43
      %p54 = scmp.eq.s32.totalorder %s20, 0
      %p55 = por %p53, %p54
      %p56 = scmp.ne.s32.totalorder %s42, %s43
      %p57 = scmp.eq.s32.totalorder %s21, 1
      %p58 = por %p56, %p57
      %p60 = scmp.ne.s32.totalorder %s43, %s59
      %p61 = scmp.eq.s32.totalorder %s21, 0
      %p62 = por %p60, %p61
      %s64 = sadd.s32 %s63, 1
      %p67 = scmp.eq.s32.totalorder %s15, 1
      %p68 = scmp.ne.s32.totalorder %s63, %s65
      %p69 = scmp.eq.s32.totalorder %s15, 0
      %p70 = por %p68, %p69
      %p71 = scmp.ne.s32.totalorder %s63, %s65
      %p72 = scmp.eq.s32.totalorder %s20, 1
      %p73 = por %p71, %p72
      %p74 = scmp.ne.s32.totalorder %s65, %s66
      %p75 = scmp.eq.s32.totalorder %s20, 0
      %p76 = por %p74, %p75
      %p77 = scmp.ne.s32.totalorder %s65, %s66
      %p78 = scmp.eq.s32.totalorder %s21, 1
      %p79 = por %p77, %p78
      %p81 = scmp.ne.s32.totalorder %s66, %s80
      %p82 = scmp.eq.s32.totalorder %s21, 0
      %p83 = por %p81, %p82
      %s85 = sadd.s32 %s84, 1
      %p88 = scmp.eq.s32.totalorder %s15, 1
      %p89 = scmp.ne.s32.totalorder %s84, %s86
      %p90 = scmp.eq.s32.totalorder %s15, 0
      %p91 = por %p89, %p90
      %p92 = scmp.ne.s32.totalorder %s84, %s86
      %p93 = scmp.eq.s32.totalorder %s20, 1
      %p94 = por %p92, %p93
      %p95 = scmp.ne.s32.totalorder %s86, %s87
      %p96 = scmp.eq.s32.totalorder %s20, 0
      %p97 = por %p95, %p96
      %p98 = scmp.ne.s32.totalorder %s86, %s87
      %p99 = scmp.eq.s32.totalorder %s21, 1
      %p100 = por %p98, %p99
      %p102 = scmp.ne.s32.totalorder %s87, %s101
      %p103 = scmp.eq.s32.totalorder %s21, 0
      %p104 = por %p102, %p103
      %s105 = ssub.s32 %s22, %s34
      %s106 = ssub.s32 %s23, %s30
      %s107 = sor.u32 %s105, %s106
      %p108 = scmp.eq.s32.totalorder %s107, 0
      %s110 = sadd.s32 %s109, 1
      %s111 = scalar_select %p108, %s109, %s110
      %p114 = pneg %p108
      %p115 = scmp.eq.s32.totalorder %s15, 1
      %p116 = por %p114, %p115
      %p117 = scmp.ne.s32.totalorder %s109, %s112
      %p118 = scmp.eq.s32.totalorder %s15, 0
      %p119 = por %p117, %p118
      %p120 = scmp.ne.s32.totalorder %s109, %s112
      %p121 = scmp.eq.s32.totalorder %s20, 1
      %p122 = por %p120, %p121
      %p123 = scmp.ne.s32.totalorder %s112, %s113
      %p124 = scmp.eq.s32.totalorder %s20, 0
      %p125 = por %p123, %p124
      %p126 = scmp.ne.s32.totalorder %s112, %s113
      %p127 = scmp.eq.s32.totalorder %s21, 1
      %p128 = por %p126, %p127
      %p130 = scmp.ne.s32.totalorder %s113, %s129
      %p131 = scmp.eq.s32.totalorder %s21, 0
      %p132 = por %p130, %p131
      %p133 = scmp.le.s32.totalorder 1, %s15
      %p134 = scmp.lt.s32.totalorder %s15, 3
      %p135 = pnand %p133, %p134
      %p136 = pneg %p135
      // Predicated region
      $region9: #{tpu_custom_call.1} parent=5 // pred_check
        _
      $region10: #{tpu_custom_call.1} parent=5 // pred_check_branch
        %138 = sbr.rel (%p135) target = $region12
      $region11: #{tpu_custom_call.1} parent=5 // pred_region
        %s139 = ssub.s32 %s15, 1
        // Predicated region
        $region13: #{tpu_custom_call.1} parent=11 // pred_check
          %p140 = pneg %p76
        $region14: #{tpu_custom_call.1} parent=11 // pred_check_branch
          %142 = sbr.rel (%p140) target = $region16
        $region15: #{tpu_custom_call.1} parent=11 // pred_region
          _
        $region16: #{tpu_custom_call.1} parent=11 // pred_fallthru
          _
        // Predicated region
        $region17: #{tpu_custom_call.1} parent=11 // pred_check
          %p143 = pneg %p97
        $region18: #{tpu_custom_call.1} parent=11 // pred_check_branch
          %145 = sbr.rel (%p143) target = $region20
        $region19: #{tpu_custom_call.1} parent=11 // pred_region
          _
        $region20: #{tpu_custom_call.1} parent=11 // pred_fallthru
          _
      $region12: #{tpu_custom_call.1} parent=5 // pred_fallthru
        _
      %p146 = scmp.lt.s32.totalorder %s15, 2
      // Predicated region
      $region21: #{tpu_custom_call.1} parent=5 // pred_check
        %p147 = pneg %p146
      $region22: #{tpu_custom_call.1} parent=5 // pred_check_branch
        %149 = sbr.rel (%p147) target = $region24
      $region23: #{tpu_custom_call.1} parent=5 // pred_region
        // Predicated region
        $region25: #{tpu_custom_call.1} parent=23 // pred_check
          %p150 = pneg %p49
        $region26: #{tpu_custom_call.1} parent=23 // pred_check_branch
          %152 = sbr.rel (%p150) target = $region28
        $region27: #{tpu_custom_call.1} parent=23 // pred_region
          %s153 = sand.u32 %s39, 1
          %s154 = scalar_lea.sflag [#allocation3], %s153
          %s155 = sand.u32 %s39, 1
          %s156 = smul.addr %s155, 48
          %s157 = scalar_lea.vmem [#allocation2], %s156
          %s158 = smul.u32 2, %s23
          %s160 = ssub.s32 768, 768
          %161 = vsyncadd %s154, %s160
          %s162 = smul.addr %s22, 6
          %s163 = sadd.s32 %s158, %s162
          %s164 = smul.addr %s163, 128
          %s165 = scalar_lea.hbm %s0, %s164
          %s166 = sshll.u32 %s157, 4
          %s167 = int_to_ptr.vmem [resolvable:$true] %s166
          %172 = dma.hbm_to_vmem [thread:$0]  %s165, 768, %s167, %s154, 256, 256, 16
        $region28: #{tpu_custom_call.1} parent=23 // pred_fallthru
          _
      $region24: #{tpu_custom_call.1} parent=5 // pred_fallthru
        _
      %p173 = scmp.le.s32.totalorder 1, %s15
      %p174 = scmp.lt.s32.totalorder %s15, 3
      %p175 = pnand %p173, %p174
      %p176 = pneg %p175
      // Predicated region
      $region29: #{tpu_custom_call.1} parent=5 // pred_check
        _
      $region30: #{tpu_custom_call.1} parent=5 // pred_check_branch
        %178 = sbr.rel (%p175) target = $region32
      $region31: #{tpu_custom_call.1} parent=5 // pred_region
        %s179 = ssub.s32 %s15, 1
        %s180 = sand.u32 %s42, 1
        %s181 = scalar_lea.sflag [#allocation3], %s180
        %s182 = sand.u32 %s42, 1
        %s183 = smul.addr %s182, 48
        %s184 = scalar_lea.vmem [#allocation2], %s183
        // Predicated region
        $region33: #{tpu_custom_call.1} parent=31 // pred_check
          %p185 = pneg %p55
        $region34: #{tpu_custom_call.1} parent=31 // pred_check_branch
          %187 = sbr.rel (%p185) target = $region36
        $region35: #{tpu_custom_call.1} parent=31 // pred_region
          %188 = dma.done %s181, 768
        $region36: #{tpu_custom_call.1} parent=31 // pred_fallthru
          _
        %s189 = sand.u32 %s42, 1
        %s190 = scalar_lea.sflag [#allocation3], %s189
        %s191 = sand.u32 %s42, 1
        %s192 = smul.addr %s191, 48
        %s193 = scalar_lea.vmem [#allocation2], %s192
        %p194 = pneg %p55
        %p195 = pneg %p52
        %p196 = pneg %p76
        %p197 = pneg %p73
        %p198 = pneg %p97
        %p199 = pneg %p94
        %p200 = pneg %p125
        %p201 = pneg %p122
        %s202 = sand.u32 %s112, 1
        %s203 = scalar_lea.sflag [#allocation4], %s202
        %s204 = sand.u32 %s112, 1
        %s205 = smul.addr %s204, 48
        %s206 = scalar_lea.vmem [#allocation5], %s205
        %s207 = smul.u32 2, %s25
        %s208 = smul.u32 2, %s25
        %v209 = vld [vmem:[%s1] sm:$0xff]
        %v210 = vld [vmem:[%s2] sm:$0xff]
        %v211 = vlaneseq
        %v212 = vshrl.u32 %v211, 7
        %vm213 = vcmp.lt.s32.totalorder %v212, 1
        %vm214 = vcmp.ge.s32.totalorder %v212, 1
        %vm215 = vcmp.lt.s32.totalorder %v212, 2
        %vm216 = vmand %vm214, %vm215
        %v217 = vld [vmem:[%s184] sm:$0xff]
        %v218 = vld [vmem:[%s184 + $0x8] sm:$0xff]
        %s219 = scalar_lea.vmem %s184, 16 [#allocation2]
        %v220 = vld [vmem:[%s219] sm:$0xff]
        %v221 = vld [vmem:[%s219 + $0x8] sm:$0xff]
        %v222 = vsel %vm216, 1, 0
        %vm223 = vcmp.eq.s32.totalorder %v222, 1
        %v224 = vsel %vm223, 0.0, %v217
        %v225 = vsel %vm223, 0.0, %v218
        %v226 = vsel %vm213, 1, 0
        %vm227 = vcmp.eq.s32.totalorder %v226, 1
        %v228 = vsel %vm227, %v220, %v224
        %v229 = vsel %vm227, %v221, %v225
        %231 = vset.pattern.permute.xlu0 0
        %232 = vperm.xlu0 %231, %v210
        %v233 = vpop.permute.xlu0 %232
        %vm235 = vcmask 64512
        %v237 = vsel %vm235, %v209, 0
        %239 = vmatprep.subr.mxu0 %v229
        %240 = vmatpush1.msra.mxu0 %v228
        %241 = vmatprep.subr.mxu0 0.0
        %242 = vmatpush1.msra.mxu0 0.0
        %243 = vmatprep.subr.mxu0 0.0
        %244 = vmatpush1.msra.mxu0 0.0
        %245 = vmatprep.subr.mxu0 0.0
        %246 = vmatpush1.msra.mxu0 0.0
        %247 = vmatprep.subr.mxu0 0.0
        %248 = vmatpush1.msra.mxu0 0.0
        %249 = vmatprep.subr.mxu0 0.0
        %250 = vmatpush1.msra.mxu0 0.0
        %251 = vmatprep.subr.mxu0 0.0
        %252 = vmatpush1.msra.mxu0 0.0
        %253 = vmatprep.subr.mxu0 0.0
        %254 = vmatpush1.msra.mxu0 0.0
        %255 = vmatprep.subr.mxu0 0.0
        %256 = vmatpush1.msra.mxu0 0.0
        %257 = vmatprep.subr.mxu0 0.0
        %258 = vmatpush1.msra.mxu0 0.0
        %259 = vmatprep.subr.mxu0 0.0
        %260 = vmatpush1.msra.mxu0 0.0
        %261 = vmatprep.subr.mxu0 0.0
        %262 = vmatpush1.msra.mxu0 0.0
        %263 = vmatprep.subr.mxu0 0.0
        %264 = vmatpush1.msra.mxu0 0.0
        %265 = vmatprep.subr.mxu0 0.0
        %266 = vmatpush1.msra.mxu0 0.0
        %267 = vmatprep.subr.mxu0 0.0
        %268 = vmatpush1.msra.mxu0 0.0
        %269 = vmatprep.subr.mxu0 0.0
        %270 = vmatpush1.msra.mxu0 0.0
        %271 = vmatprep.subr.mxu0 0.0
        %272 = vmatpush1.msra.mxu0 0.0
        %273 = vmatprep.subr.mxu0 0.0
        %274 = vmatpush1.msra.mxu0 0.0
        %275 = vmatprep.subr.mxu0 0.0
        %276 = vmatpush1.msra.mxu0 0.0
        %277 = vmatprep.subr.mxu0 0.0
        %278 = vmatpush1.msra.mxu0 0.0
        %279 = vmatprep.subr.mxu0 0.0
        %280 = vmatpush1.msra.mxu0 0.0
        %281 = vmatprep.subr.mxu0 0.0
        %282 = vmatpush1.msra.mxu0 0.0
        %283 = vmatprep.subr.mxu0 0.0
        %284 = vmatpush1.msra.mxu0 0.0
        %285 = vmatprep.subr.mxu0 0.0
        %286 = vmatpush1.msra.mxu0 0.0
        %287 = vmatprep.subr.mxu0 0.0
        %288 = vmatpush1.msra.mxu0 0.0
        %289 = vmatprep.subr.mxu0 0.0
        %290 = vmatpush1.msra.mxu0 0.0
        %291 = vmatprep.subr.mxu0 0.0
        %292 = vmatpush1.msra.mxu0 0.0
        %293 = vmatprep.subr.mxu0 0.0
        %294 = vmatpush1.msra.mxu0 0.0
        %295 = vmatprep.subr.mxu0 0.0
        %296 = vmatpush1.msra.mxu0 0.0
        %297 = vmatprep.subr.mxu0 0.0
        %298 = vmatpush1.msra.mxu0 0.0
        %299 = vmatprep.subr.mxu0 0.0
        %300 = vmatpush1.msra.mxu0 0.0
        %301 = vmatprep.subr.mxu0 0.0
        %302 = vmatpush1.msra.mxu0 0.0
        %303 = vmatprep.mubr.f32.mxu0 0.0
        %304 = vmatmul.mubr.f32.gmra.mrb[0].mxu0 %v237
        %v305 = vpop.f32.mrb[0].mxu0
        %v306 = vadd.f32 %v233, %v305
        %v307 = vpop.f32.mrb[0].mxu0
        %v308 = vadd.f32 %v233, %v307
        %309 = vdwg.mxu0
        %310 = vst [vmem:[%s206] sm:$0xff] %v306
        %311 = vst [vmem:[%s206 + $0x8] sm:$0xff] %v308
        %v312 = vld [vmem:[%s219] sm:$0xff]
        %v313 = vld [vmem:[%s219 + $0x8] sm:$0xff]
        %s314 = scalar_lea.vmem %s184, 32 [#allocation2]
        %v315 = vld [vmem:[%s314] sm:$0xff]
        %v316 = vld [vmem:[%s314 + $0x8] sm:$0xff]
        %v317 = vld [vmem:[%s184] sm:$0xff]
        %v318 = vld [vmem:[%s184 + $0x8] sm:$0xff]
        %v319 = vsel %vm223, %v317, %v312
        %v320 = vsel %vm223, %v318, %v313
        %v321 = vsel %vm227, %v315, %v319
        %v322 = vsel %vm227, %v316, %v320
        %323 = vmatprep.subr.mxu0 %v322
        %324 = vmatpush1.msra.mxu0 %v321
        %325 = vmatprep.subr.mxu0 0.0
        %326 = vmatpush1.msra.mxu0 0.0
        %327 = vmatprep.subr.mxu0 0.0
        %328 = vmatpush1.msra.mxu0 0.0
        %329 = vmatprep.subr.mxu0 0.0
        %330 = vmatpush1.msra.mxu0 0.0
        %331 = vmatprep.subr.mxu0 0.0
        %332 = vmatpush1.msra.mxu0 0.0
        %333 = vmatprep.subr.mxu0 0.0
        %334 = vmatpush1.msra.mxu0 0.0
        %335 = vmatprep.subr.mxu0 0.0
        %336 = vmatpush1.msra.mxu0 0.0
        %337 = vmatprep.subr.mxu0 0.0
        %338 = vmatpush1.msra.mxu0 0.0
        %339 = vmatprep.subr.mxu0 0.0
        %340 = vmatpush1.msra.mxu0 0.0
        %341 = vmatprep.subr.mxu0 0.0
        %342 = vmatpush1.msra.mxu0 0.0
        %343 = vmatprep.subr.mxu0 0.0
        %344 = vmatpush1.msra.mxu0 0.0
        %345 = vmatprep.subr.mxu0 0.0
        %346 = vmatpush1.msra.mxu0 0.0
        %347 = vmatprep.subr.mxu0 0.0
        %348 = vmatpush1.msra.mxu0 0.0
        %349 = vmatprep.subr.mxu0 0.0
        %350 = vmatpush1.msra.mxu0 0.0
        %351 = vmatprep.subr.mxu0 0.0
        %352 = vmatpush1.msra.mxu0 0.0
        %353 = vmatprep.subr.mxu0 0.0
        %354 = vmatpush1.msra.mxu0 0.0
        %355 = vmatprep.subr.mxu0 0.0
        %356 = vmatpush1.msra.mxu0 0.0
        %357 = vmatprep.subr.mxu0 0.0
        %358 = vmatpush1.msra.mxu0 0.0
        %359 = vmatprep.subr.mxu0 0.0
        %360 = vmatpush1.msra.mxu0 0.0
        %361 = vmatprep.subr.mxu0 0.0
        %362 = vmatpush1.msra.mxu0 0.0
        %363 = vmatprep.subr.mxu0 0.0
        %364 = vmatpush1.msra.mxu0 0.0
        %365 = vmatprep.subr.mxu0 0.0
        %366 = vmatpush1.msra.mxu0 0.0
        %367 = vmatprep.subr.mxu0 0.0
        %368 = vmatpush1.msra.mxu0 0.0
        %369 = vmatprep.subr.mxu0 0.0
        %370 = vmatpush1.msra.mxu0 0.0
        %371 = vmatprep.subr.mxu0 0.0
        %372 = vmatpush1.msra.mxu0 0.0
        %373 = vmatprep.subr.mxu0 0.0
        %374 = vmatpush1.msra.mxu0 0.0
        %375 = vmatprep.subr.mxu0 0.0
        %376 = vmatpush1.msra.mxu0 0.0
        %377 = vmatprep.subr.mxu0 0.0
        %378 = vmatpush1.msra.mxu0 0.0
        %379 = vmatprep.subr.mxu0 0.0
        %380 = vmatpush1.msra.mxu0 0.0
        %381 = vmatprep.subr.mxu0 0.0
        %382 = vmatpush1.msra.mxu0 0.0
        %383 = vmatprep.subr.mxu0 0.0
        %384 = vmatpush1.msra.mxu0 0.0
        %385 = vmatprep.subr.mxu0 0.0
        %386 = vmatpush1.msra.mxu0 0.0
        %387 = vmatprep.mubr.f32.mxu0 0.0
        %388 = vmatmul.mubr.f32.gmra.mrb[0].mxu0 %v237
        %v389 = vpop.f32.mrb[0].mxu0
        %v390 = vadd.f32 %v233, %v389
        %v391 = vpop.f32.mrb[0].mxu0
        %v392 = vadd.f32 %v233, %v391
        %393 = vdwg.mxu0
        %s394 = scalar_lea.vmem %s206, 16 [#allocation5]
        %395 = vst [vmem:[%s394] sm:$0xff] %v390
        %396 = vst [vmem:[%s394 + $0x8] sm:$0xff] %v392
        %v397 = vld [vmem:[%s314] sm:$0xff]
        %v398 = vld [vmem:[%s314 + $0x8] sm:$0xff]
        %v399 = vld [vmem:[%s219] sm:$0xff]
        %v400 = vld [vmem:[%s219 + $0x8] sm:$0xff]
        %v401 = vsel %vm223, %v399, %v397
        %v402 = vsel %vm223, %v400, %v398
        %v403 = vsel %vm227, 0.0, %v401
        %v404 = vsel %vm227, 0.0, %v402
        %405 = vmatprep.subr.mxu0 %v404
        %406 = vmatpush1.msra.mxu0 %v403
        %407 = vmatprep.subr.mxu0 0.0
        %408 = vmatpush1.msra.mxu0 0.0
        %409 = vmatprep.subr.mxu0 0.0
        %410 = vmatpush1.msra.mxu0 0.0
        %411 = vmatprep.subr.mxu0 0.0
        %412 = vmatpush1.msra.mxu0 0.0
        %413 = vmatprep.subr.mxu0 0.0
        %414 = vmatpush1.msra.mxu0 0.0
        %415 = vmatprep.subr.mxu0 0.0
        %416 = vmatpush1.msra.mxu0 0.0
        %417 = vmatprep.subr.mxu0 0.0
        %418 = vmatpush1.msra.mxu0 0.0
        %419 = vmatprep.subr.mxu0 0.0
        %420 = vmatpush1.msra.mxu0 0.0
        %421 = vmatprep.subr.mxu0 0.0
        %422 = vmatpush1.msra.mxu0 0.0
        %423 = vmatprep.subr.mxu0 0.0
        %424 = vmatpush1.msra.mxu0 0.0
        %425 = vmatprep.subr.mxu0 0.0
        %426 = vmatpush1.msra.mxu0 0.0
        %427 = vmatprep.subr.mxu0 0.0
        %428 = vmatpush1.msra.mxu0 0.0
        %429 = vmatprep.subr.mxu0 0.0
        %430 = vmatpush1.msra.mxu0 0.0
        %431 = vmatprep.subr.mxu0 0.0
        %432 = vmatpush1.msra.mxu0 0.0
        %433 = vmatprep.subr.mxu0 0.0
        %434 = vmatpush1.msra.mxu0 0.0
        %435 = vmatprep.subr.mxu0 0.0
        %436 = vmatpush1.msra.mxu0 0.0
        %437 = vmatprep.subr.mxu0 0.0
        %438 = vmatpush1.msra.mxu0 0.0
        %439 = vmatprep.subr.mxu0 0.0
        %440 = vmatpush1.msra.mxu0 0.0
        %441 = vmatprep.subr.mxu0 0.0
        %442 = vmatpush1.msra.mxu0 0.0
        %443 = vmatprep.subr.mxu0 0.0
        %444 = vmatpush1.msra.mxu0 0.0
        %445 = vmatprep.subr.mxu0 0.0
        %446 = vmatpush1.msra.mxu0 0.0
        %447 = vmatprep.subr.mxu0 0.0
        %448 = vmatpush1.msra.mxu0 0.0
        %449 = vmatprep.subr.mxu0 0.0
        %450 = vmatpush1.msra.mxu0 0.0
        %451 = vmatprep.subr.mxu0 0.0
        %452 = vmatpush1.msra.mxu0 0.0
        %453 = vmatprep.subr.mxu0 0.0
        %454 = vmatpush1.msra.mxu0 0.0
        %455 = vmatprep.subr.mxu0 0.0
        %456 = vmatpush1.msra.mxu0 0.0
        %457 = vmatprep.subr.mxu0 0.0
        %458 = vmatpush1.msra.mxu0 0.0
        %459 = vmatprep.subr.mxu0 0.0
        %460 = vmatpush1.msra.mxu0 0.0
        %461 = vmatprep.subr.mxu0 0.0
        %462 = vmatpush1.msra.mxu0 0.0
        %463 = vmatprep.subr.mxu0 0.0
        %464 = vmatpush1.msra.mxu0 0.0
        %465 = vmatprep.subr.mxu0 0.0
        %466 = vmatpush1.msra.mxu0 0.0
        %467 = vmatprep.subr.mxu0 0.0
        %468 = vmatpush1.msra.mxu0 0.0
        %469 = vmatprep.mubr.f32.mxu0 0.0
        %470 = vmatmul.mubr.f32.gmra.mrb[0].mxu0 %v237
        %v471 = vpop.f32.mrb[0].mxu0
        %v472 = vadd.f32 %v233, %v471
        %v473 = vpop.f32.mrb[0].mxu0
        %v474 = vadd.f32 %v233, %v473
        %475 = vdwg.mxu0
        %s476 = scalar_lea.vmem %s206, 32 [#allocation5]
        %477 = vst [vmem:[%s476] sm:$0xff] %v472
        %478 = vst [vmem:[%s476 + $0x8] sm:$0xff] %v474
        %s479 = sand.u32 %s112, 1
        %s480 = scalar_lea.sflag [#allocation4], %s479
        %s481 = sand.u32 %s112, 1
        %s482 = smul.addr %s481, 48
        %s483 = scalar_lea.vmem [#allocation5], %s482
        // Predicated region
        $region37: #{tpu_custom_call.1} parent=31 // pred_check
          %p484 = pneg %p122
        $region38: #{tpu_custom_call.1} parent=31 // pred_check_branch
          %486 = sbr.rel (%p484) target = $region40
        $region39: #{tpu_custom_call.1} parent=31 // pred_region
          %s487 = smul.u32 2, %s25
          %s489 = ssub.s32 768, 768
          %490 = vsyncadd %s480, %s489
          %s491 = smul.addr %s24, 6
          %s492 = sadd.s32 %s487, %s491
          %s493 = smul.addr %s492, 128
          %s494 = scalar_lea.hbm %s3, %s493
          %s495 = sshll.u32 %s483, 4
          %s496 = int_to_ptr.vmem [resolvable:$true] %s495
          %501 = dma.vmem_to_hbm [thread:$0]  %s496, 768, %s494, %s480, 256, 256, 16
        $region40: #{tpu_custom_call.1} parent=31 // pred_fallthru
          _
      $region32: #{tpu_custom_call.1} parent=5 // pred_fallthru
        _
      %p502 = scmp.le.s32.totalorder 2, %s15
      // Predicated region
      $region41: #{tpu_custom_call.1} parent=5 // pred_check
        %p503 = pneg %p502
      $region42: #{tpu_custom_call.1} parent=5 // pred_check_branch
        %505 = sbr.rel (%p503) target = $region44
      $region43: #{tpu_custom_call.1} parent=5 // pred_region
        %s506 = ssub.s32 %s15, 2
        // Predicated region
        $region45: #{tpu_custom_call.1} parent=43 // pred_check
          %p507 = pneg %p128
        $region46: #{tpu_custom_call.1} parent=43 // pred_check_branch
          %509 = sbr.rel (%p507) target = $region48
        $region47: #{tpu_custom_call.1} parent=43 // pred_region
          %s510 = sand.u32 %s113, 1
          %s511 = scalar_lea.sflag [#allocation4], %s510
          %s512 = sand.u32 %s113, 1
          %s513 = smul.addr %s512, 48
          %s514 = scalar_lea.vmem [#allocation5], %s513
          %515 = dma.done %s511, 768
        $region48: #{tpu_custom_call.1} parent=43 // pred_fallthru
          _
      $region44: #{tpu_custom_call.1} parent=5 // pred_fallthru
        _
    $region6: #{tpu_custom_call.1} parent=1 // loop_footer
      %s19 = sadd.s32 1, %s15
    $region7: #{tpu_custom_call.1} parent=1 // loop_footer_branch
      %14 = sbr.rel target = $region3
    $region8: #{tpu_custom_call.1} parent=1 // loop_exit
      _
    %516 = vsyncpa [#allocation3], 1
    %s517 = scalar_lea.sflag [#allocation3], 1
    %518 = vsyncpa %s517, 1
    %519 = vsyncpa [#allocation4], 1
    %s520 = scalar_lea.sflag [#allocation4], 1
    %521 = vsyncpa %s520, 1

</llo_original>
